<compile_context>
chip_gen: v5e
topology: v5e:2x2
jax: 0.10.0
libtpu: 0.0.40
codegen_flags: <defaults>
</compile_context>

<pallas_src>
import numpy as np
import jax
import jax.numpy as jnp
from jax import lax
from jax.experimental import pallas as pl
from jax.experimental.pallas import tpu as pltpu

NUM_JOINTS = 24
NUM_POSE_BASIS = 9 * (NUM_JOINTS - 1)  # 207

# standard SMPL kinematic tree (index 0 is the root; its parent entry is unused)
SMPL_PARENTS = np.array(
    [0, 0, 0, 0, 1, 2, 3, 4, 5, 6, 7, 8, 9, 9, 9, 12, 13, 14, 16, 17, 18, 19, 20, 21],
    dtype=np.int32,
)


def _round_up(x, m):
    return ((x + m - 1) // m) * m


def _pick_tile(total):
    # largest lane-friendly tile that divides `total` (total is a multiple of 128)
    for t in (3456, 2304, 2048, 1536, 1024, 768, 512, 384, 256, 128):
        if total % t == 0:
            return t
    return 128


# ----------------------------- Pallas kernels ------------------------------

def _blend_kernel(coeff_ref, dirs_ref, vt_ref, out_ref):
    # one column tile of the planar (B, 3*Vp) blend output:
    #   out = [beta|pose_feature] @ [shapedirs;posedirs] + v_template
    out_ref[...] = (
        jnp.dot(coeff_ref[...], dirs_ref[...], preferred_element_type=jnp.float32)
        + vt_ref[...]
    )


def blend_pallas(coeff, dirs_p, v_template_p, tile):
    B, K = coeff.shape
    F3p = dirs_p.shape[1]
    n = F3p // tile
    return pl.pallas_call(
        _blend_kernel,
        out_shape=jax.ShapeDtypeStruct((B, F3p), jnp.float32),
        grid=(n,),
        in_specs=[
            pl.BlockSpec((B, K), lambda i: (0, 0)),        # [beta|pose_feature] resident
            pl.BlockSpec((K, tile), lambda i: (0, i)),     # streamed bf16 dirs tile
            pl.BlockSpec((1, tile), lambda i: (0, i)),     # v_template tile
        ],
        out_specs=pl.BlockSpec((B, tile), lambda i: (0, i)),
        compiler_params=pltpu.CompilerParams(dimension_semantics=("parallel",)),
    )(coeff, dirs_p, v_template_p)


def _skin_kernel(wT_ref, aT_ref, vp_ref, out_ref):
    # T^T[4r+c, v] = sum_j A[b, j, r, c] * W[v, j]   (A's constant 4th row dropped)
    T = jnp.dot(aT_ref[0], wT_ref[...], preferred_element_type=jnp.float32)  # (12, tile)
    vp = vp_ref[0]                                                           # (3, tile)
    x, y, z = vp[0:1], vp[1:2], vp[2:3]
    for r in range(3):
        row = (T[4 * r:4 * r + 1] * x
               + T[4 * r + 1:4 * r + 2] * y
               + T[4 * r + 2:4 * r + 3] * z
               + T[4 * r + 3:4 * r + 4])
        out_ref[0, r:r + 1, :] = row                                         # lane-dense store


def skinning_pallas(weights_T, A12T, v_posed_p3, tile):
    # weights_T: (24, Vp); A12T: (B, 12, 24); v_posed_p3: (B, 3, Vp)
    B = A12T.shape[0]
    Vp = weights_T.shape[1]
    n = Vp // tile
    return pl.pallas_call(
        _skin_kernel,
        out_shape=jax.ShapeDtypeStruct((B, 3, Vp), jnp.float32),
        grid=(B, n),
        in_specs=[
            pl.BlockSpec((NUM_JOINTS, tile), lambda b, t: (0, t)),     # W^T tile
            pl.BlockSpec((1, 12, NUM_JOINTS), lambda b, t: (b, 0, 0)),  # per-batch A (3 rows)
            pl.BlockSpec((1, 3, tile), lambda b, t: (b, 0, t)),
        ],
        out_specs=pl.BlockSpec((1, 3, tile), lambda b, t: (b, 0, t)),
        compiler_params=pltpu.CompilerParams(
            dimension_semantics=("parallel", "parallel")),
    )(weights_T, A12T, v_posed_p3)


# ------------------------------ JAX glue ops -------------------------------

def quat2mat(quat):
    norm_quat = quat / jnp.linalg.norm(quat, axis=1, keepdims=True)
    w, x, y, z = norm_quat[:, 0], norm_quat[:, 1], norm_quat[:, 2], norm_quat[:, 3]
    B = quat.shape[0]
    w2, x2, y2, z2 = w ** 2, x ** 2, y ** 2, z ** 2
    wx, wy, wz = w * x, w * y, w * z
    xy, xz, yz = x * y, x * z, y * z
    rotMat = jnp.stack(
        [
            w2 + x2 - y2 - z2, 2 * xy - 2 * wz, 2 * wy + 2 * xz,
            2 * wz + 2 * xy, w2 - x2 + y2 - z2, 2 * yz - 2 * wx,
            2 * xz - 2 * wy, 2 * wx + 2 * yz, w2 - x2 - y2 + z2,
        ],
        axis=1,
    ).reshape(B, 3, 3)
    return rotMat


def batch_rodrigues(theta):
    l1norm = jnp.sqrt(jnp.sum((theta + 1e-8) ** 2, axis=1))
    angle = l1norm[:, None]
    normalized = theta / angle
    angle = angle * 0.5
    v_cos = jnp.cos(angle)
    v_sin = jnp.sin(angle)
    quat = jnp.concatenate([v_cos, v_sin * normalized], axis=1)
    return quat2mat(quat)


def batch_global_rigid_transformation(Rs, Js, parent):
    """Kinematic-chain walk as a lax.scan (Rs: (N,24,3,3), Js: (N,24,3))."""
    N = Rs.shape[0]
    K = parent.shape[0]
    Js_e = Js[..., None]                                            # (N, 24, 3, 1)

    def make_A_root(R, t):
        R_homo = jnp.pad(R, ((0, 0), (0, 1), (0, 0)))               # (N, 4, 3)
        t_homo = jnp.concatenate([t, jnp.ones((N, 1, 1), jnp.float32)], axis=1)
        return jnp.concatenate([R_homo, t_homo], axis=2)            # (N, 4, 4)

    A0 = make_A_root(Rs[:, 0], Js_e[:, 0])

    # local transforms for joints 1..K-1 (relative to parent), built in one shot
    rel_t = Js_e[:, 1:] - Js_e[:, parent[1:]]                       # (N, K-1, 3, 1)
    R_h = jnp.pad(Rs[:, 1:], ((0, 0), (0, 0), (0, 1), (0, 0)))      # (N, K-1, 4, 3)
    t_h = jnp.concatenate([rel_t, jnp.ones((N, K - 1, 1, 1), jnp.float32)], axis=2)
    A_local = jnp.concatenate([R_h, t_h], axis=3)                   # (N, K-1, 4, 4)

    parents_arr = jnp.asarray(parent, dtype=jnp.int32)

    def step(carry, inp):
        idx, A_loc = inp                                            # scalar, (N,4,4)
        parent_world = carry[parents_arr[idx]]                      # (N,4,4)
        world = jnp.matmul(parent_world, A_loc)
        return carry.at[idx].set(world), None

    init = jnp.zeros((K, N, 4, 4), jnp.float32).at[0].set(A0)
    xs = (jnp.arange(1, K, dtype=jnp.int32), jnp.transpose(A_local, (1, 0, 2, 3)))
    results_kn, _ = lax.scan(step, init, xs)
    results = jnp.transpose(results_kn, (1, 0, 2, 3))               # (N, K, 4, 4)

    new_J = results[:, :, :3, 3]
    Js_w0 = jnp.concatenate([Js_e, jnp.zeros((N, K, 1, 1), jnp.float32)], axis=2)
    init_bone = jnp.matmul(results, Js_w0)                          # (N, K, 4, 1)
    init_bone = jnp.pad(init_bone, ((0, 0), (0, 0), (0, 0), (3, 0)))
    A = results - init_bone
    return new_J, A


# ------------------------- parameter preprocessing ---------------------------

def prepare_smpl_params(params):
    """One-time rearrangement to planar (coords-major), 128-padded layouts."""
    hp = lax.Precision.HIGHEST
    v_template = params["v_template"]        # (V, 3)
    shapedirs = params["shapedirs"]          # (NB, 3V) interleaved (torch layout)
    posedirs = params["posedirs"]            # (207, 3V) interleaved
    J_regressor = params["J_regressor"]      # (V, 24)
    weights = params["weights"]              # (V, 24)

    V = v_template.shape[0]
    NB = shapedirs.shape[0]
    Vp = _round_up(V, 128)

    def planar_pad(dirs):
        r = dirs.shape[0]
        p = jnp.transpose(dirs.reshape(r, V, 3), (0, 2, 1))         # (r, 3, V)
        p = jnp.pad(p, ((0, 0), (0, 0), (0, Vp - V)))
        return p.reshape(r, 3 * Vp)

    # stacked [shapedirs; posedirs] basis stored in bf16 (halves the dominant HBM stream;
    # accumulation stays f32 via preferred_element_type in the kernel)
    dirs_p = jnp.concatenate(
        [planar_pad(shapedirs), planar_pad(posedirs)], axis=0).astype(jnp.bfloat16)

    # hoisted joint regression (exact algebra: J is linear in v_shaped)
    sd3 = jnp.transpose(shapedirs.reshape(NB, V, 3), (2, 0, 1))      # (3, NB, V)
    J_dirs = jnp.matmul(sd3, J_regressor, precision=hp)              # (3, NB, 24)
    J_tmpl = jnp.matmul(v_template.T, J_regressor, precision=hp)     # (3, 24)

    return {
        "V": V,
        "V_pad": Vp,
        "blend_tile": _pick_tile(3 * Vp),
        "skin_tile": _pick_tile(Vp),
        "dirs_p": dirs_p,
        "v_template_p": jnp.pad(v_template.T, ((0, 0), (0, Vp - V))).reshape(1, 3 * Vp),
        "weights_T_p": jnp.pad(weights.T, ((0, 0), (0, Vp - V))),
        "J_dirs": J_dirs,
        "J_tmpl": J_tmpl,
    }


# ------------------------------ SMPL forward --------------------------------

def smpl_forward(prep, beta, theta, get_skin=True):
    hp = lax.Precision.HIGHEST
    B = beta.shape[0]
    V, Vp = prep["V"], prep["V_pad"]

    Rs = batch_rodrigues(theta.reshape(-1, 3)).reshape(B, NUM_JOINTS, 3, 3)
    e3 = jnp.eye(3, dtype=jnp.float32)
    pose_feature = (Rs[:, 1:, :, :] - e3).reshape(B, NUM_POSE_BASIS)

    # joint regression hoisted out of the kernel (tiny, exact algebraic rewrite)
    J = (jnp.einsum("bn,cnj->bjc", beta, prep["J_dirs"], precision=hp)
         + prep["J_tmpl"].T[None])                                   # (B, 24, 3)

    # fused shape-blend + pose-blend: single streaming bf16 MXU matmul over vertex tiles
    coeff = jnp.concatenate([beta, pose_feature], axis=1).astype(jnp.bfloat16)  # (B, 217)
    v_posed_p = blend_pallas(coeff, prep["dirs_p"], prep["v_template_p"],
                             prep["blend_tile"])                     # (B, 3*Vp) f32

    J_transformed, A = batch_global_rigid_transformation(Rs, J, SMPL_PARENTS)

    # skinning: only the 3 xyz rows of each 4x4 transform are needed
    A12T = jnp.transpose(A[:, :, :3, :].reshape(B, NUM_JOINTS, 12), (0, 2, 1))  # (B,12,24)
    v_posed_p3 = v_posed_p.reshape(B, 3, Vp)
    verts_p = skinning_pallas(prep["weights_T_p"], A12T, v_posed_p3,
                              prep["skin_tile"])                     # (B, 3, Vp)
    verts = jnp.transpose(verts_p[:, :, :V], (0, 2, 1))              # (B, V, 3)

    if get_skin:
        return verts, J_transformed, Rs
    return J_transformed


# -------------------------- pure-JAX reference ------------------------------

def _rigid_transform_ref(Rs, Js, parent):
    # python-loop version mirroring the torch code (used only for validation)
    N = Rs.shape[0]
    Js_e = Js[..., None]

    def make_A(R, t):
        R_homo = jnp.pad(R, ((0, 0), (0, 1), (0, 0)))
        t_homo = jnp.concatenate([t, jnp.ones((N, 1, 1), jnp.float32)], 1)
        return jnp.concatenate([R_homo, t_homo], axis=2)

    results = [make_A(Rs[:, 0], Js_e[:, 0])]
    for i in range(1, parent.shape[0]):
        j_here = Js_e[:, i] - Js_e[:, int(parent[i])]
        results.append(jnp.matmul(results[int(parent[i])], make_A(Rs[:, i], j_here)))
    results = jnp.stack(results, axis=1)
    new_J = results[:, :, :3, 3]
    Js_w0 = jnp.concatenate([Js_e, jnp.zeros((N, NUM_JOINTS, 1, 1), jnp.float32)], axis=2)
    init_bone = jnp.matmul(results, Js_w0)
    init_bone = jnp.pad(init_bone, ((0, 0), (0, 0), (0, 0), (3, 0)))
    return new_J, results - init_bone


def smpl_forward_ref(params, beta, theta):
    hp = jax.lax.Precision.HIGHEST
    B = beta.shape[0]
    V = params["v_template"].shape[0]
    v_shaped = (
        jnp.matmul(beta, params["shapedirs"], precision=hp).reshape(B, V, 3)
        + params["v_template"]
    )
    Jx = jnp.matmul(v_shaped[:, :, 0], params["J_regressor"], precision=hp)
    Jy = jnp.matmul(v_shaped[:, :, 1], params["J_regressor"], precision=hp)
    Jz = jnp.matmul(v_shaped[:, :, 2], params["J_regressor"], precision=hp)
    J = jnp.stack([Jx, Jy, Jz], axis=2)
    Rs = batch_rodrigues(theta.reshape(-1, 3)).reshape(B, NUM_JOINTS, 3, 3)
    pose_feature = (Rs[:, 1:] - jnp.eye(3, dtype=jnp.float32)).reshape(B, NUM_POSE_BASIS)
    v_posed = (
        jnp.matmul(pose_feature, params["posedirs"], precision=hp).reshape(B, V, 3)
        + v_shaped
    )
    J_transformed, A = _rigid_transform_ref(Rs, J, SMPL_PARENTS)
    W = jnp.broadcast_to(params["weights"][None], (B, V, NUM_JOINTS))
    T = jnp.matmul(W, A.reshape(B, NUM_JOINTS, 16), precision=hp).reshape(B, V, 4, 4)
    ph = jnp.concatenate([v_posed, jnp.ones((B, V, 1), jnp.float32)], axis=2)
    v_homo = jnp.matmul(T, ph[..., None], precision=hp)
    verts = v_homo[:, :, :3, 0]
    return verts, J_transformed, Rs


# --------------------------------- main --------------------------------------

if __name__ == "__main__":
    B = 2          # batch
    V = 256        # vertices (small synthetic mesh; real SMPL has 6890)
    NB = 10        # shape betas

    key = jax.random.PRNGKey(0)
    k1, k2, k3, k4, k5, k6, k7 = jax.random.split(key, 7)

    # deterministic synthetic SMPL parameters (no .pkl loading), torch-layout
    params = {
        "v_template": (jax.random.normal(k1, (V, 3)) * 0.5).astype(jnp.float32),
        "shapedirs": (jax.random.normal(k2, (NB, V * 3)) * 0.01).astype(jnp.float32),
        "J_regressor": jax.nn.softmax(jax.random.normal(k3, (V, NUM_JOINTS)), axis=0).astype(jnp.float32),
        "posedirs": (jax.random.normal(k4, (NUM_POSE_BASIS, V * 3)) * 0.01).astype(jnp.float32),
        "weights": jax.nn.softmax(jax.random.normal(k5, (V, NUM_JOINTS)), axis=1).astype(jnp.float32),
    }
    prep = prepare_smpl_params(params)

    beta = jax.random.normal(k6, (B, NB)).astype(jnp.float32)
    theta = (jax.random.normal(k7, (B, NUM_JOINTS * 3)) * 0.2).astype(jnp.float32)

    fwd = jax.jit(lambda b, t: smpl_forward(prep, b, t, get_skin=True))
    verts, joints, Rs = fwd(beta, theta)
    jax.block_until_ready((verts, joints, Rs))

    # validate against a pure-JAX reference (original torch-style layout + loop chain)
    verts_ref, joints_ref, Rs_ref = smpl_forward_ref(params, beta, theta)
    assert verts.shape == (B, V, 3) and joints.shape == (B, NUM_JOINTS, 3) and Rs.shape == (B, NUM_JOINTS, 3, 3)
    assert jnp.allclose(verts, verts_ref, atol=2e-2, rtol=2e-2)
    assert jnp.allclose(joints, joints_ref, atol=2e-2, rtol=2e-2)
    assert jnp.allclose(Rs, Rs_ref, atol=1e-4, rtol=1e-4)

    print("KERNEL_OK")
</pallas_src>

<mosaic_0001>
module attributes {stable_mosaic.version = 11 : i64} {
  func.func @_blend_kernel(%arg0: i32, %arg1: memref<2x217xbf16, #tpu.memory_space<vmem>>, %arg2: memref<217x768xbf16, #tpu.memory_space<vmem>>, %arg3: memref<1x768xf32, #tpu.memory_space<vmem>>, %arg4: memref<2x768xf32, #tpu.memory_space<vmem>>) attributes {dimension_semantics = [#tpu.dimension_semantics<parallel>], iteration_bounds = array<i64: 1>, scalar_prefetch = 0 : i64, scratch_operands = 0 : i64, tpu.core_type = #tpu.core_type<tc>, window_params = [{pipeline_mode = #tpu.pipeline_mode<synchronous>, transform_indices = @transform_0, window_bounds = array<i64: 2, 217>}, {transform_indices = @transform_1, window_bounds = array<i64: 217, 768>}, {transform_indices = @transform_2, window_bounds = array<i64: 1, 768>}, {transform_indices = @transform_3, window_bounds = array<i64: 2, 768>}]} {
    %c0 = arith.constant 0 : index
    %c0_0 = arith.constant 0 : index
    %0 = vector.load %arg1[%c0, %c0_0] : memref<2x217xbf16, #tpu.memory_space<vmem>>, vector<2x217xbf16>
    %c0_1 = arith.constant 0 : index
    %c0_2 = arith.constant 0 : index
    %1 = vector.load %arg2[%c0_1, %c0_2] : memref<217x768xbf16, #tpu.memory_space<vmem>>, vector<217x768xbf16>
    %cst = arith.constant dense<0.000000e+00> : vector<2x768xf32>
    %2 = tpu.matmul %0, %1, %cst {dimension_numbers = #tpu.dot_dimension_numbers<[1], [0], [0], [1], [0, 0, 1, 1], [], []>} : vector<2x217xbf16>, vector<217x768xbf16>, vector<2x768xf32> -> vector<2x768xf32>
    %c0_3 = arith.constant 0 : index
    %c0_4 = arith.constant 0 : index
    %3 = vector.load %arg3[%c0_3, %c0_4] : memref<1x768xf32, #tpu.memory_space<vmem>>, vector<1x768xf32>
    %4 = vector.broadcast %3 : vector<1x768xf32> to vector<2x768xf32>
    %5 = arith.addf %2, %4 : vector<2x768xf32>
    %c0_5 = arith.constant 0 : index
    %c0_6 = arith.constant 0 : index
    %6 = vector.load %arg4[%c0_5, %c0_6] : memref<2x768xf32, #tpu.memory_space<vmem>>, vector<2x768xf32>
    tpu.vector_store %arg4[%c0_5, %c0_6], %5 {strides = array<i32>} : memref<2x768xf32, #tpu.memory_space<vmem>>, vector<2x768xf32>,
    return
  }
  func.func @transform_0(%arg0: i32) -> (i32, i32) {
    %c0_i32 = arith.constant 0 : i32
    %c0_i32_0 = arith.constant 0 : i32
    %c0_i32_1 = arith.constant 0 : i32
    return %c0_i32, %c0_i32_0 : i32, i32
  }
  func.func @transform_1(%arg0: i32) -> (i32, i32) {
    %c0_i32 = arith.constant 0 : i32
    %c0_i32_0 = arith.constant 0 : i32
    return %c0_i32, %arg0 : i32, i32
  }
  func.func @transform_2(%arg0: i32) -> (i32, i32) {
    %c0_i32 = arith.constant 0 : i32
    %c0_i32_0 = arith.constant 0 : i32
    return %c0_i32, %arg0 : i32, i32
  }
  func.func @transform_3(%arg0: i32) -> (i32, i32) {
    %c0_i32 = arith.constant 0 : i32
    %c0_i32_0 = arith.constant 0 : i32
    return %c0_i32, %arg0 : i32, i32
  }
}

module attributes {stable_mosaic.version = 11 : i64} {
  func.func @_skin_kernel(%arg0: i32, %arg1: i32, %arg2: memref<24x256xf32, #tpu.memory_space<vmem>>, %arg3: memref<1x12x24xf32, #tpu.memory_space<vmem>>, %arg4: memref<1x3x256xf32, #tpu.memory_space<vmem>>, %arg5: memref<1x3x256xf32, #tpu.memory_space<vmem>>) attributes {dimension_semantics = [#tpu.dimension_semantics<parallel>, #tpu.dimension_semantics<parallel>], iteration_bounds = array<i64: 2, 1>, scalar_prefetch = 0 : i64, scratch_operands = 0 : i64, tpu.core_type = #tpu.core_type<tc>, window_params = [{transform_indices = @transform_0, window_bounds = array<i64: 24, 256>}, {transform_indices = @transform_1, window_bounds = array<i64: 1, 12, 24>}, {transform_indices = @transform_2, window_bounds = array<i64: 1, 3, 256>}, {transform_indices = @transform_3, window_bounds = array<i64: 1, 3, 256>}]} {
    %c0 = arith.constant 0 : index
    %c0_0 = arith.constant 0 : index
    %c0_1 = arith.constant 0 : index
    %0 = vector.load %arg3[%c0, %c0_0, %c0_1] : memref<1x12x24xf32, #tpu.memory_space<vmem>>, vector<1x12x24xf32>
    %1 = vector.shape_cast %0 : vector<1x12x24xf32> to vector<12x24xf32>
    %c0_2 = arith.constant 0 : index
    %c0_3 = arith.constant 0 : index
    %2 = vector.load %arg2[%c0_2, %c0_3] : memref<24x256xf32, #tpu.memory_space<vmem>>, vector<24x256xf32>
    %cst = arith.constant dense<0.000000e+00> : vector<12x256xf32>
    %3 = tpu.matmul %1, %2, %cst {dimension_numbers = #tpu.dot_dimension_numbers<[1], [0], [0], [1], [0, 0, 1, 1], [], []>} : vector<12x24xf32>, vector<24x256xf32>, vector<12x256xf32> -> vector<12x256xf32>
    %c0_4 = arith.constant 0 : index
    %c0_5 = arith.constant 0 : index
    %c0_6 = arith.constant 0 : index
    %4 = vector.load %arg4[%c0_4, %c0_5, %c0_6] : memref<1x3x256xf32, #tpu.memory_space<vmem>>, vector<1x3x256xf32>
    %5 = vector.shape_cast %4 : vector<1x3x256xf32> to vector<3x256xf32>
    %6 = vector.extract_strided_slice %5 {offsets = [0, 0], sizes = [1, 256], strides = [1, 1]} : vector<3x256xf32> to vector<1x256xf32>
    %7 = vector.extract_strided_slice %5 {offsets = [1, 0], sizes = [1, 256], strides = [1, 1]} : vector<3x256xf32> to vector<1x256xf32>
    %8 = vector.extract_strided_slice %5 {offsets = [2, 0], sizes = [1, 256], strides = [1, 1]} : vector<3x256xf32> to vector<1x256xf32>
    %9 = vector.extract_strided_slice %3 {offsets = [0, 0], sizes = [1, 256], strides = [1, 1]} : vector<12x256xf32> to vector<1x256xf32>
    %10 = arith.mulf %9, %6 : vector<1x256xf32>
    %11 = vector.extract_strided_slice %3 {offsets = [1, 0], sizes = [1, 256], strides = [1, 1]} : vector<12x256xf32> to vector<1x256xf32>
    %12 = arith.mulf %11, %7 : vector<1x256xf32>
    %13 = arith.addf %10, %12 : vector<1x256xf32>
    %14 = vector.extract_strided_slice %3 {offsets = [2, 0], sizes = [1, 256], strides = [1, 1]} : vector<12x256xf32> to vector<1x256xf32>
    %15 = arith.mulf %14, %8 : vector<1x256xf32>
    %16 = arith.addf %13, %15 : vector<1x256xf32>
    %17 = vector.extract_strided_slice %3 {offsets = [3, 0], sizes = [1, 256], strides = [1, 1]} : vector<12x256xf32> to vector<1x256xf32>
    %18 = arith.addf %16, %17 : vector<1x256xf32>
    %c0_7 = arith.constant 0 : index
    %c0_8 = arith.constant 0 : index
    %c0_9 = arith.constant 0 : index
    %19 = vector.load %arg5[%c0_7, %c0_8, %c0_9] : memref<1x3x256xf32, #tpu.memory_space<vmem>>, vector<1x1x256xf32>
    %20 = vector.shape_cast %19 : vector<1x1x256xf32> to vector<1x256xf32>
    %21 = vector.shape_cast %18 : vector<1x256xf32> to vector<1x1x256xf32>
    tpu.vector_store %arg5[%c0_7, %c0_8, %c0_9], %21 {strides = array<i32>} : memref<1x3x256xf32, #tpu.memory_space<vmem>>, vector<1x1x256xf32>,
    %22 = vector.extract_strided_slice %3 {offsets = [4, 0], sizes = [1, 256], strides = [1, 1]} : vector<12x256xf32> to vector<1x256xf32>
    %23 = arith.mulf %22, %6 : vector<1x256xf32>
    %24 = vector.extract_strided_slice %3 {offsets = [5, 0], sizes = [1, 256], strides = [1, 1]} : vector<12x256xf32> to vector<1x256xf32>
    %25 = arith.mulf %24, %7 : vector<1x256xf32>
    %26 = arith.addf %23, %25 : vector<1x256xf32>
    %27 = vector.extract_strided_slice %3 {offsets = [6, 0], sizes = [1, 256], strides = [1, 1]} : vector<12x256xf32> to vector<1x256xf32>
    %28 = arith.mulf %27, %8 : vector<1x256xf32>
    %29 = arith.addf %26, %28 : vector<1x256xf32>
    %30 = vector.extract_strided_slice %3 {offsets = [7, 0], sizes = [1, 256], strides = [1, 1]} : vector<12x256xf32> to vector<1x256xf32>
    %31 = arith.addf %29, %30 : vector<1x256xf32>
    %c0_10 = arith.constant 0 : index
    %c1 = arith.constant 1 : index
    %c0_11 = arith.constant 0 : index
    %32 = vector.load %arg5[%c0_10, %c1, %c0_11] : memref<1x3x256xf32, #tpu.memory_space<vmem>>, vector<1x1x256xf32>
    %33 = vector.shape_cast %32 : vector<1x1x256xf32> to vector<1x256xf32>
    %34 = vector.shape_cast %31 : vector<1x256xf32> to vector<1x1x256xf32>
    tpu.vector_store %arg5[%c0_10, %c1, %c0_11], %34 {strides = array<i32>} : memref<1x3x256xf32, #tpu.memory_space<vmem>>, vector<1x1x256xf32>,
    %35 = vector.extract_strided_slice %3 {offsets = [8, 0], sizes = [1, 256], strides = [1, 1]} : vector<12x256xf32> to vector<1x256xf32>
    %36 = arith.mulf %35, %6 : vector<1x256xf32>
    %37 = vector.extract_strided_slice %3 {offsets = [9, 0], sizes = [1, 256], strides = [1, 1]} : vector<12x256xf32> to vector<1x256xf32>
    %38 = arith.mulf %37, %7 : vector<1x256xf32>
    %39 = arith.addf %36, %38 : vector<1x256xf32>
    %40 = vector.extract_strided_slice %3 {offsets = [10, 0], sizes = [1, 256], strides = [1, 1]} : vector<12x256xf32> to vector<1x256xf32>
    %41 = arith.mulf %40, %8 : vector<1x256xf32>
    %42 = arith.addf %39, %41 : vector<1x256xf32>
    %43 = vector.extract_strided_slice %3 {offsets = [11, 0], sizes = [1, 256], strides = [1, 1]} : vector<12x256xf32> to vector<1x256xf32>
    %44 = arith.addf %42, %43 : vector<1x256xf32>
    %c0_12 = arith.constant 0 : index
    %c2 = arith.constant 2 : index
    %c0_13 = arith.constant 0 : index
    %45 = vector.load %arg5[%c0_12, %c2, %c0_13] : memref<1x3x256xf32, #tpu.memory_space<vmem>>, vector<1x1x256xf32>
    %46 = vector.shape_cast %45 : vector<1x1x256xf32> to vector<1x256xf32>
    %47 = vector.shape_cast %44 : vector<1x256xf32> to vector<1x1x256xf32>
    tpu.vector_store %arg5[%c0_12, %c2, %c0_13], %47 {strides = array<i32>} : memref<1x3x256xf32, #tpu.memory_space<vmem>>, vector<1x1x256xf32>,
    return
  }
  func.func @transform_0(%arg0: i32, %arg1: i32) -> (i32, i32) {
    %c0_i32 = arith.constant 0 : i32
    %c0_i32_0 = arith.constant 0 : i32
    return %c0_i32, %arg1 : i32, i32
  }
  func.func @transform_1(%arg0: i32, %arg1: i32) -> (i32, i32, i32) {
    %c0_i32 = arith.constant 0 : i32
    %c0_i32_0 = arith.constant 0 : i32
    %c0_i32_1 = arith.constant 0 : i32
    return %arg0, %c0_i32, %c0_i32_0 : i32, i32, i32
  }
  func.func @transform_2(%arg0: i32, %arg1: i32) -> (i32, i32, i32) {
    %c0_i32 = arith.constant 0 : i32
    %c0_i32_0 = arith.constant 0 : i32
    return %arg0, %c0_i32, %arg1 : i32, i32, i32
  }
  func.func @transform_3(%arg0: i32, %arg1: i32) -> (i32, i32, i32) {
    %c0_i32 = arith.constant 0 : i32
    %c0_i32_0 = arith.constant 0 : i32
    return %arg0, %c0_i32, %arg1 : i32, i32, i32
  }
}

</mosaic_0001>

<llo_original>
// kernel: _lambda_.3
$region0: #{_lambda_.3}
  #allocation0 [shape = 'u32[]', space=smem, size = 0x4, offset = 0x4, fixed_abs, tag = 'smem constant byte address 0x4 - core index']
  #allocation1 [shape = 'u32[72,128]{1,0:T(1,128)}', space=vmem, size = 0x9000, scoped, tag = 'internal scratch']
  %s0 = inlined_call_operand.vmem [shape: f32[24,256], index: 0, kind: input, shape index: {}]
  %s1 = inlined_call_operand.vmem [shape: f32[2,12,24], index: 1, kind: input, shape index: {}]
  %s2 = inlined_call_operand.vmem [shape: f32[2,3,256], index: 2, kind: input, shape index: {}]
  %s3 = inlined_call_operand.vmem [shape: f32[2,3,256], index: 3, kind: output, shape index: {}]
  %s4 = sld [smem:[#allocation0]]
  $region45: #{_lambda_.3} parent=0
    _
  %s6 = ssub.s32 1, %s4
  %s7 = scalar_select 0, %s6, %s4
  loop: start=0, step=1, limit=4
  $region2: #{_lambda_.3} parent=0 // loop_pre_header
    _
  $region3: #{_lambda_.3} parent=0 // loop_header
    %s9 = sphi 0, %s13
    %p10 = scmp.ge.s32.totalorder %s9, 4
    %s16 = sphi 0, %s28
    %s17 = sphi 0, %s24
    %s18 = sphi 0, %s16
    %s19 = sphi 0, %s17
    %s20 = sphi 0, %s18
    %s21 = sphi 0, %s19
    %s31 = sphi 0, %s33
    %s34 = sphi 0, %s31
    %s35 = sphi 0, %s34
    %s51 = sphi 0, %s35
    %s57 = sphi 0, %s59
    %s60 = sphi 0, %s57
    %s61 = sphi 0, %s60
    %s77 = sphi 0, %s61
    %s85 = sphi 0, %s87
    %s88 = sphi 0, %s85
    %s89 = sphi 0, %s88
    %s105 = sphi 0, %s89
    %s113 = sphi 0, %s115
    %s116 = sphi 0, %s113
    %s117 = sphi 0, %s116
    %s133 = sphi 0, %s117
  $region4: #{_lambda_.3} parent=0 // loop_header_branch
    %12 = sbr.rel (%p10) target = $region8
  $region5: #{_lambda_.3} parent=0 // loop_body
    %s14 = ssub.s32 %s9, 1
    %s15 = ssub.s32 %s9, 2
    %s22 = sadd.s32 1, %s17
    %p23 = scmp.ge.s32.totalorder %s22, 1
    %s24 = scalar_select %p23, 0, %s22
    %s25 = sadd.s32 1, %s16
    %s26 = scalar_select %p23, %s25, %s16
    %p27 = scmp.ge.s32.totalorder %s26, 2
    %s28 = scalar_select %p27, 0, %s26
    %s29 = ssub.s32 %s17, %s24
    %p30 = scmp.eq.s32.totalorder %s29, 0
    %s32 = sadd.s32 %s31, 1
    %s33 = scalar_select %p30, %s31, %s32
    %p36 = pneg %p30
    %p37 = scmp.eq.s32.totalorder %s9, 1
    %p38 = por %p36, %p37
    %p39 = scmp.ne.s32.totalorder %s31, %s34
    %p40 = scmp.eq.s32.totalorder %s9, 0
    %p41 = por %p39, %p40
    %p42 = scmp.ne.s32.totalorder %s31, %s34
    %p43 = scmp.eq.s32.totalorder %s14, 1
    %p44 = por %p42, %p43
    %p45 = scmp.ne.s32.totalorder %s34, %s35
    %p46 = scmp.eq.s32.totalorder %s14, 0
    %p47 = por %p45, %p46
    %p48 = scmp.ne.s32.totalorder %s34, %s35
    %p49 = scmp.eq.s32.totalorder %s15, 1
    %p50 = por %p48, %p49
    %p52 = scmp.ne.s32.totalorder %s35, %s51
    %p53 = scmp.eq.s32.totalorder %s15, 0
    %p54 = por %p52, %p53
    %s55 = ssub.s32 %s16, %s28
    %p56 = scmp.eq.s32.totalorder %s55, 0
    %s58 = sadd.s32 %s57, 1
    %s59 = scalar_select %p56, %s57, %s58
    %p62 = pneg %p56
    %p63 = scmp.eq.s32.totalorder %s9, 1
    %p64 = por %p62, %p63
    %p65 = scmp.ne.s32.totalorder %s57, %s60
    %p66 = scmp.eq.s32.totalorder %s9, 0
    %p67 = por %p65, %p66
    %p68 = scmp.ne.s32.totalorder %s57, %s60
    %p69 = scmp.eq.s32.totalorder %s14, 1
    %p70 = por %p68, %p69
    %p71 = scmp.ne.s32.totalorder %s60, %s61
    %p72 = scmp.eq.s32.totalorder %s14, 0
    %p73 = por %p71, %p72
    %p74 = scmp.ne.s32.totalorder %s60, %s61
    %p75 = scmp.eq.s32.totalorder %s15, 1
    %p76 = por %p74, %p75
    %p78 = scmp.ne.s32.totalorder %s61, %s77
    %p79 = scmp.eq.s32.totalorder %s15, 0
    %p80 = por %p78, %p79
    %s81 = ssub.s32 %s16, %s28
    %s82 = ssub.s32 %s17, %s24
    %s83 = sor.u32 %s81, %s82
    %p84 = scmp.eq.s32.totalorder %s83, 0
    %s86 = sadd.s32 %s85, 1
    %s87 = scalar_select %p84, %s85, %s86
    %p90 = pneg %p84
    %p91 = scmp.eq.s32.totalorder %s9, 1
    %p92 = por %p90, %p91
    %p93 = scmp.ne.s32.totalorder %s85, %s88
    %p94 = scmp.eq.s32.totalorder %s9, 0
    %p95 = por %p93, %p94
    %p96 = scmp.ne.s32.totalorder %s85, %s88
    %p97 = scmp.eq.s32.totalorder %s14, 1
    %p98 = por %p96, %p97
    %p99 = scmp.ne.s32.totalorder %s88, %s89
    %p100 = scmp.eq.s32.totalorder %s14, 0
    %p101 = por %p99, %p100
    %p102 = scmp.ne.s32.totalorder %s88, %s89
    %p103 = scmp.eq.s32.totalorder %s15, 1
    %p104 = por %p102, %p103
    %p106 = scmp.ne.s32.totalorder %s89, %s105
    %p107 = scmp.eq.s32.totalorder %s15, 0
    %p108 = por %p106, %p107
    %s109 = ssub.s32 %s16, %s28
    %s110 = ssub.s32 %s17, %s24
    %s111 = sor.u32 %s109, %s110
    %p112 = scmp.eq.s32.totalorder %s111, 0
    %s114 = sadd.s32 %s113, 1
    %s115 = scalar_select %p112, %s113, %s114
    %p118 = pneg %p112
    %p119 = scmp.eq.s32.totalorder %s9, 1
    %p120 = por %p118, %p119
    %p121 = scmp.ne.s32.totalorder %s113, %s116
    %p122 = scmp.eq.s32.totalorder %s9, 0
    %p123 = por %p121, %p122
    %p124 = scmp.ne.s32.totalorder %s113, %s116
    %p125 = scmp.eq.s32.totalorder %s14, 1
    %p126 = por %p124, %p125
    %p127 = scmp.ne.s32.totalorder %s116, %s117
    %p128 = scmp.eq.s32.totalorder %s14, 0
    %p129 = por %p127, %p128
    %p130 = scmp.ne.s32.totalorder %s116, %s117
    %p131 = scmp.eq.s32.totalorder %s15, 1
    %p132 = por %p130, %p131
    %p134 = scmp.ne.s32.totalorder %s117, %s133
    %p135 = scmp.eq.s32.totalorder %s15, 0
    %p136 = por %p134, %p135
    %p137 = scmp.le.s32.totalorder 1, %s9
    %p138 = scmp.lt.s32.totalorder %s9, 3
    %p139 = pnand %p137, %p138
    %p140 = pneg %p139
    // Predicated region
    $region9: #{_lambda_.3} parent=5 // pred_check
      _
    $region10: #{_lambda_.3} parent=5 // pred_check_branch
      %142 = sbr.rel (%p139) target = $region12
    $region11: #{_lambda_.3} parent=5 // pred_region
      %s143 = ssub.s32 %s9, 1
      // Predicated region
      $region13: #{_lambda_.3} parent=11 // pred_check
        %p144 = pneg %p47
      $region14: #{_lambda_.3} parent=11 // pred_check_branch
        %146 = sbr.rel (%p144) target = $region16
      $region15: #{_lambda_.3} parent=11 // pred_region
        %s147 = smul.u32 2, %s19
        %p148 = scmp.lt.s32.totalorder %s147, 1
        %s149 = scalar_select %p148, %s147, 1
        %s150 = smul.addr %s149, 8
        %s151 = scalar_lea.vmem %s0, %s150
        %s152 = smul.u32 2, %s19
      $region16: #{_lambda_.3} parent=11 // pred_fallthru
        _
    $region12: #{_lambda_.3} parent=5 // pred_fallthru
      _
    %p153 = scmp.lt.s32.totalorder %s9, 2
    // Predicated region
    $region17: #{_lambda_.3} parent=5 // pred_check
      %p154 = pneg %p153
    $region18: #{_lambda_.3} parent=5 // pred_check_branch
      %156 = sbr.rel (%p154) target = $region20
    $region19: #{_lambda_.3} parent=5 // pred_region
      // Predicated region
      $region21: #{_lambda_.3} parent=19 // pred_check
        %p157 = pneg %p67
      $region22: #{_lambda_.3} parent=19 // pred_check_branch
        %159 = sbr.rel (%p157) target = $region24
      $region23: #{_lambda_.3} parent=19 // pred_region
        %p160 = scmp.lt.s32.totalorder %s16, 1
        %s161 = scalar_select %p160, %s16, 1
        %s162 = smul.addr %s161, 2
        %s163 = smul.addr %s162, 8
        %s164 = scalar_lea.vmem %s1, %s163
      $region24: #{_lambda_.3} parent=19 // pred_fallthru
        _
      // Predicated region
      $region25: #{_lambda_.3} parent=19 // pred_check
        %p165 = pneg %p95
      $region26: #{_lambda_.3} parent=19 // pred_check_branch
        %167 = sbr.rel (%p165) target = $region28
      $region27: #{_lambda_.3} parent=19 // pred_region
        %s168 = smul.u32 2, %s17
        %p169 = scmp.lt.s32.totalorder %s16, 1
        %s170 = scalar_select %p169, %s16, 1
        %p171 = scmp.lt.s32.totalorder %s168, 1
        %s172 = scalar_select %p171, %s168, 1
        %s173 = smul.addr %s170, 2
        %s174 = sadd.s32 %s172, %s173
        %s175 = smul.addr %s174, 4
        %s176 = scalar_lea.vmem %s2, %s175
        %s177 = smul.u32 2, %s17
      $region28: #{_lambda_.3} parent=19 // pred_fallthru
        _
    $region20: #{_lambda_.3} parent=5 // pred_fallthru
      _
    %p178 = scmp.le.s32.totalorder 1, %s9
    %p179 = scmp.lt.s32.totalorder %s9, 3
    %p180 = pnand %p178, %p179
    %p181 = pneg %p180
    // Predicated region
    $region29: #{_lambda_.3} parent=5 // pred_check
      _
    $region30: #{_lambda_.3} parent=5 // pred_check_branch
      %183 = sbr.rel (%p180) target = $region32
    $region31: #{_lambda_.3} parent=5 // pred_region
      %s184 = ssub.s32 %s9, 1
      %s185 = smul.u32 2, %s19
      %p186 = scmp.lt.s32.totalorder %s185, 1
      %s187 = scalar_select %p186, %s185, 1
      %s188 = smul.addr %s187, 8
      %s189 = scalar_lea.vmem %s0, %s188
      %p190 = pneg %p47
      %p191 = pneg %p44
      %p192 = scmp.lt.s32.totalorder %s18, 1
      %s193 = scalar_select %p192, %s18, 1
      %s194 = smul.addr %s193, 2
      %s195 = smul.addr %s194, 8
      %s196 = scalar_lea.vmem %s1, %s195
      %p197 = pneg %p73
      %p198 = pneg %p70
      %s199 = smul.u32 2, %s19
      %p200 = scmp.lt.s32.totalorder %s18, 1
      %s201 = scalar_select %p200, %s18, 1
      %p202 = scmp.lt.s32.totalorder %s199, 1
      %s203 = scalar_select %p202, %s199, 1
      %s204 = smul.addr %s201, 2
      %s205 = sadd.s32 %s203, %s204
      %s206 = smul.addr %s205, 4
      %s207 = scalar_lea.vmem %s2, %s206
      %p208 = pneg %p101
      %p209 = pneg %p98
      %p210 = pneg %p129
      %p211 = pneg %p126
      %s212 = smul.u32 2, %s19
      %p213 = scmp.lt.s32.totalorder %s18, 1
      %s214 = scalar_select %p213, %s18, 1
      %p215 = scmp.lt.s32.totalorder %s212, 1
      %s216 = scalar_select %p215, %s212, 1
      %s217 = smul.addr %s214, 2
      %s218 = sadd.s32 %s216, %s217
      %s219 = smul.addr %s218, 4
      %s220 = scalar_lea.vmem %s3, %s219
      %s221 = smul.u32 2, %s19
      %p222 = scmp.lt.s32.totalorder %s221, 1
      %s223 = scalar_select %p222, %s221, 1
      %s224 = smul.addr %s223, 8
      %s225 = scalar_lea.vmem %s0, %s224
      %s226 = smul.u32 2, %s19
      %p227 = scmp.lt.s32.totalorder %s18, 1
      %s228 = scalar_select %p227, %s18, 1
      %s229 = smul.addr %s228, 2
      %s230 = smul.addr %s229, 8
      %s231 = scalar_lea.vmem %s1, %s230
      %s232 = smul.u32 2, %s19
      %p233 = scmp.lt.s32.totalorder %s18, 1
      %s234 = scalar_select %p233, %s18, 1
      %p235 = scmp.lt.s32.totalorder %s232, 1
      %s236 = scalar_select %p235, %s232, 1
      %s237 = smul.addr %s234, 2
      %s238 = sadd.s32 %s236, %s237
      %s239 = smul.addr %s238, 4
      %s240 = scalar_lea.vmem %s2, %s239
      %s241 = smul.u32 2, %s19
      %s242 = smul.u32 2, %s19
      %p243 = scmp.lt.s32.totalorder %s18, 1
      %s244 = scalar_select %p243, %s18, 1
      %p245 = scmp.lt.s32.totalorder %s242, 1
      %s246 = scalar_select %p245, %s242, 1
      %s247 = smul.addr %s244, 2
      %s248 = sadd.s32 %s246, %s247
      %s249 = smul.addr %s248, 4
      %s250 = scalar_lea.vmem %s3, %s249
      %s251 = smul.u32 2, %s19
      %v252 = vld [vmem:[%s231] sm:$0xff]
      %v253 = vld [vmem:[%s231 + $0x8] sm:$0xf]
      %v254 = vld [vmem:[%s225] sm:$0xff]
      %v255 = vld [vmem:[%s225 + $0x8] sm:$0xff]
      %v256 = vld [vmem:[%s225 + $0x10] sm:$0xff]
      %v257 = vld [vmem:[%s225 + $0x18] sm:$0xff]
      %v258 = vld [vmem:[%s225 + $0x20] sm:$0xff]
      %v259 = vld [vmem:[%s225 + $0x28] sm:$0xff]
      %vm260 = vcmask 195584
      %v262 = vsel %vm260, %v252, 0
      %v265 = vsel %vm260, %v253, 0
      %267 = vmatpush.msra.mxu0 0.0
      %268 = vmatpush.msra.mxu0 0.0
      %269 = vmatpush.msra.mxu0 0.0
      %270 = vmatpush.msra.mxu0 0.0
      %271 = vmatpush.msra.mxu0 0.0
      %272 = vmatpush.msra.mxu0 0.0
      %273 = vmatpush.msra.mxu0 0.0
      %274 = vmatpush.msra.mxu0 0.0
      %275 = vmatpush.msra.mxu0 0.0
      %276 = vmatpush.msra.mxu0 0.0
      %277 = vmatpush.msra.mxu0 0.0
      %278 = vmatpush.msra.mxu0 0.0
      %279 = vmatpush.msra.mxu0 0.0
      %280 = vmatpush.msra.mxu0 %v258
      %281 = vmatpush.msra.mxu0 %v256
      %282 = vmatpush.msra.mxu0 %v254
      %283 = vmatmul.f32.gmra.mxu0 %v262
      %v284 = vpop.f32.mrf.mxu0
      %v285 = vadd.f32 0.0, %v284
      %286 = vmatmul.f32.gmra.mxu0 %v265
      %v287 = vpop.f32.mrf.mxu0
      %v288 = vadd.f32 0.0, %v287
      %289 = vdwg.mxu0
      %290 = vmatpush.msra.mxu0 0.0
      %291 = vmatpush.msra.mxu0 0.0
      %292 = vmatpush.msra.mxu0 0.0
      %293 = vmatpush.msra.mxu0 0.0
      %294 = vmatpush.msra.mxu0 0.0
      %295 = vmatpush.msra.mxu0 0.0
      %296 = vmatpush.msra.mxu0 0.0
      %297 = vmatpush.msra.mxu0 0.0
      %298 = vmatpush.msra.mxu0 0.0
      %299 = vmatpush.msra.mxu0 0.0
      %300 = vmatpush.msra.mxu0 0.0
      %301 = vmatpush.msra.mxu0 0.0
      %302 = vmatpush.msra.mxu0 0.0
      %303 = vmatpush.msra.mxu0 %v259
      %304 = vmatpush.msra.mxu0 %v257
      %305 = vmatpush.msra.mxu0 %v255
      %306 = vmatmul.f32.gmra.mxu0 %v262
      %v307 = vpop.f32.mrf.mxu0
      %v308 = vadd.f32 0.0, %v307
      %309 = vmatmul.f32.gmra.mxu0 %v265
      %v310 = vpop.f32.mrf.mxu0
      %v311 = vadd.f32 0.0, %v310
      %312 = vdwg.mxu0
      %v313 = vld [vmem:[%s240] sm:$0x77]
      %v315 = vperm.slane %v313, 0
      %v316 = vperm.slane %v313, 4
      %v319 = vmul.f32 %v285, %v315
      %v320 = vmul.f32 %v308, %v316
      %v321 = vperm.slane %v313, 1
      %v322 = vperm.slane %v313, 5
      %v325 = vmul.f32 %v285, %v321
      %v326 = vmul.f32 %v308, %v322
      %v329 = vrot.slane %v325, 1
      %v330 = vrot.slane %v326, 1
      %v333 = vadd.f32 %v319, %v329
      %v334 = vadd.f32 %v320, %v330
      %v335 = vperm.slane %v313, 2
      %v336 = vperm.slane %v313, 6
      %v339 = vmul.f32 %v285, %v335
      %v340 = vmul.f32 %v308, %v336
      %v343 = vrot.slane %v339, 2
      %v344 = vrot.slane %v340, 2
      %v347 = vadd.f32 %v333, %v343
      %v348 = vadd.f32 %v334, %v344
      %v351 = vrot.slane %v285, 3
      %v352 = vrot.slane %v308, 3
      %v355 = vadd.f32 %v347, %v351
      %v356 = vadd.f32 %v348, %v352
      %v359 = vrot.slane %v356, 7
      %vm360 = vcmask 1040384
      %v361 = vsel %vm360, %v355, %v359
      %v363 = vlaneseq
      %vm364 = vcmp.ge.s32.totalorder %v363, 0
      %vm365 = vcmp.lt.s32.totalorder %v363, 256
      %vm366 = vmand %vm364, %vm365
      %367 = vst.msk [vmem:[%s250] ss:$4 sm:$0x3] %vm366, %v361
      %368 = vst [vmem:[#allocation1] sm:$0xff] %v355
      %369 = vst [vmem:[#allocation1 + $0x9] sm:$0xff] %v356
      %s370 = scalar_lea.vmem [#allocation1], 4
      %v371 = vld [vmem:[%s370] ss:$9 sm:$0xff]
      %s373 = scalar_lea.vmem %s250, 1
      %374 = vst.msk [vmem:[%s373] ss:$4 sm:$0x3] %vm366, %v371
      %v375 = vmul.f32 %v288, %v315
      %v376 = vmul.f32 %v311, %v316
      %v377 = vmul.f32 %v288, %v321
      %v378 = vmul.f32 %v311, %v322
      %v381 = vrot.slane %v377, 1
      %v382 = vrot.slane %v378, 1
      %v385 = vadd.f32 %v375, %v381
      %v386 = vadd.f32 %v376, %v382
      %v387 = vmul.f32 %v288, %v335
      %v388 = vmul.f32 %v311, %v336
      %v391 = vrot.slane %v387, 2
      %v392 = vrot.slane %v388, 2
      %v395 = vadd.f32 %v385, %v391
      %v396 = vadd.f32 %v386, %v392
      %v399 = vrot.slane %v288, 3
      %v400 = vrot.slane %v311, 3
      %v403 = vadd.f32 %v395, %v399
      %v404 = vadd.f32 %v396, %v400
      %v407 = vrot.slane %v404, 7
      %v408 = vsel %vm360, %v403, %v407
      %s410 = scalar_lea.vmem %s250, 2
      %411 = vst.msk [vmem:[%s410] ss:$4 sm:$0x3] %vm366, %v408
      %s412 = smul.u32 2, %s19
      %p413 = scmp.lt.s32.totalorder %s18, 1
      %s414 = scalar_select %p413, %s18, 1
      %p415 = scmp.lt.s32.totalorder %s412, 1
      %s416 = scalar_select %p415, %s412, 1
      %s417 = smul.addr %s414, 2
      %s418 = sadd.s32 %s416, %s417
      %s419 = smul.addr %s418, 4
      %s420 = scalar_lea.vmem %s3, %s419
      // Predicated region
      $region33: #{_lambda_.3} parent=31 // pred_check
        %p421 = pneg %p126
      $region34: #{_lambda_.3} parent=31 // pred_check_branch
        %423 = sbr.rel (%p421) target = $region36
      $region35: #{_lambda_.3} parent=31 // pred_region
        %s424 = smul.u32 2, %s19
      $region36: #{_lambda_.3} parent=31 // pred_fallthru
        _
    $region32: #{_lambda_.3} parent=5 // pred_fallthru
      _
    %p425 = scmp.le.s32.totalorder 2, %s9
    // Predicated region
    $region37: #{_lambda_.3} parent=5 // pred_check
      %p426 = pneg %p425
    $region38: #{_lambda_.3} parent=5 // pred_check_branch
      %428 = sbr.rel (%p426) target = $region40
    $region39: #{_lambda_.3} parent=5 // pred_region
      %s429 = ssub.s32 %s9, 2
      // Predicated region
      $region41: #{_lambda_.3} parent=39 // pred_check
        %p430 = pneg %p132
      $region42: #{_lambda_.3} parent=39 // pred_check_branch
        %432 = sbr.rel (%p430) target = $region44
      $region43: #{_lambda_.3} parent=39 // pred_region
        %s433 = smul.u32 2, %s21
        %p434 = scmp.lt.s32.totalorder %s20, 1
        %s435 = scalar_select %p434, %s20, 1
        %p436 = scmp.lt.s32.totalorder %s433, 1
        %s437 = scalar_select %p436, %s433, 1
        %s438 = smul.addr %s435, 2
        %s439 = sadd.s32 %s437, %s438
        %s440 = smul.addr %s439, 4
        %s441 = scalar_lea.vmem %s3, %s440
      $region44: #{_lambda_.3} parent=39 // pred_fallthru
        _
    $region40: #{_lambda_.3} parent=5 // pred_fallthru
      _
  $region6: #{_lambda_.3} parent=0 // loop_footer
    %s13 = sadd.s32 1, %s9
  $region7: #{_lambda_.3} parent=0 // loop_footer_branch
    %8 = sbr.rel target = $region3
  $region8: #{_lambda_.3} parent=0 // loop_exit
    _

// kernel: _lambda_.2
$region0: #{_lambda_.2}
  #allocation0 [shape = 'u32[]', space=smem, size = 0x4, offset = 0x4, fixed_abs, tag = 'smem constant byte address 0x4 - core index']
  #allocation1 [shape = 'u32[72,128]{1,0:T(1,128)}', space=vmem, size = 0x9000, scoped, tag = 'internal scratch']
  %s0 = inlined_call_operand.vmem [shape: bf16[2,217], index: 0, kind: input, shape index: {}]
  %s1 = inlined_call_operand.vmem [shape: bf16[217,768], index: 1, kind: input, shape index: {}]
  %s2 = inlined_call_operand.vmem [shape: f32[1,768], index: 2, kind: input, shape index: {}]
  %s3 = inlined_call_operand.vmem [shape: f32[2,768], index: 3, kind: output, shape index: {}]
  %s4 = sld [smem:[#allocation0]]
  $region22: #{_lambda_.2} parent=0
    _
  %s6 = ssub.s32 1, %s4
  %s7 = scalar_select 0, %s6, %s4
  // Predicated region
  $region2: #{_lambda_.2} parent=0 // pred_check
    _
  $region3: #{_lambda_.2} parent=0 // pred_check_branch
    %9 = sbr.rel (0) target = $region5
  $region4: #{_lambda_.2} parent=0 // pred_region
    _
  $region5: #{_lambda_.2} parent=0 // pred_fallthru
    _
  // Predicated region
  $region6: #{_lambda_.2} parent=0 // pred_check
    _
  $region7: #{_lambda_.2} parent=0 // pred_check_branch
    %11 = sbr.rel (0) target = $region9
  $region8: #{_lambda_.2} parent=0 // pred_region
    _
  $region9: #{_lambda_.2} parent=0 // pred_fallthru
    _
  // Predicated region
  $region10: #{_lambda_.2} parent=0 // pred_check
    _
  $region11: #{_lambda_.2} parent=0 // pred_check_branch
    %13 = sbr.rel (0) target = $region13
  $region12: #{_lambda_.2} parent=0 // pred_region
    _
  $region13: #{_lambda_.2} parent=0 // pred_fallthru
    _
  %v15 = vld [vmem:[%s0] sm:$0x3]
  %v16 = vld [vmem:[%s1] sm:$0xff]
  %v17 = vld [vmem:[%s1 + $0x8] sm:$0xff]
  %v18 = vld [vmem:[%s1 + $0x10] sm:$0xff]
  %v19 = vld [vmem:[%s1 + $0x18] sm:$0xff]
  %v20 = vld [vmem:[%s1 + $0x20] sm:$0xff]
  %v21 = vld [vmem:[%s1 + $0x28] sm:$0xff]
  %v22 = vld [vmem:[%s1 + $0x30] sm:$0xff]
  %v23 = vld [vmem:[%s1 + $0x38] sm:$0xff]
  %v24 = vld [vmem:[%s1 + $0x40] sm:$0xff]
  %v25 = vld [vmem:[%s1 + $0x48] sm:$0xff]
  %v26 = vld [vmem:[%s1 + $0x50] sm:$0xff]
  %v27 = vld [vmem:[%s1 + $0x58] sm:$0xff]
  %v28 = vld [vmem:[%s1 + $0x60] sm:$0xff]
  %v29 = vld [vmem:[%s1 + $0x68] sm:$0xff]
  %v30 = vld [vmem:[%s1 + $0x70] sm:$0xff]
  %v31 = vld [vmem:[%s1 + $0x78] sm:$0xff]
  %v32 = vld [vmem:[%s1 + $0x80] sm:$0xff]
  %v33 = vld [vmem:[%s1 + $0x88] sm:$0xff]
  %v34 = vld [vmem:[%s1 + $0x90] sm:$0xff]
  %v35 = vld [vmem:[%s1 + $0x98] sm:$0xff]
  %v36 = vld [vmem:[%s1 + $0xa0] sm:$0xff]
  %v37 = vld [vmem:[%s1 + $0xa8] sm:$0xff]
  %v38 = vld [vmem:[%s1 + $0xb0] sm:$0xff]
  %v39 = vld [vmem:[%s1 + $0xb8] sm:$0xff]
  %v40 = vld [vmem:[%s1 + $0xc0] sm:$0xff]
  %v41 = vld [vmem:[%s1 + $0xc8] sm:$0xff]
  %v42 = vld [vmem:[%s1 + $0xd0] sm:$0xff]
  %v43 = vld [vmem:[%s1 + $0xd8] sm:$0xff]
  %v44 = vld [vmem:[%s1 + $0xe0] sm:$0xff]
  %v45 = vld [vmem:[%s1 + $0xe8] sm:$0xff]
  %v46 = vld [vmem:[%s1 + $0xf0] sm:$0xff]
  %v47 = vld [vmem:[%s1 + $0xf8] sm:$0xff]
  %v48 = vld [vmem:[%s1 + $0x100] sm:$0xff]
  %v49 = vld [vmem:[%s1 + $0x108] sm:$0xff]
  %v50 = vld [vmem:[%s1 + $0x110] sm:$0xff]
  %v51 = vld [vmem:[%s1 + $0x118] sm:$0xff]
  %v52 = vld [vmem:[%s1 + $0x120] sm:$0xff]
  %v53 = vld [vmem:[%s1 + $0x128] sm:$0xff]
  %v54 = vld [vmem:[%s1 + $0x130] sm:$0xff]
  %v55 = vld [vmem:[%s1 + $0x138] sm:$0xff]
  %v56 = vld [vmem:[%s1 + $0x140] sm:$0xff]
  %v57 = vld [vmem:[%s1 + $0x148] sm:$0xff]
  %v58 = vld [vmem:[%s1 + $0x150] sm:$0xff]
  %v59 = vld [vmem:[%s1 + $0x158] sm:$0xff]
  %v60 = vld [vmem:[%s1 + $0x160] sm:$0xff]
  %v61 = vld [vmem:[%s1 + $0x168] sm:$0xff]
  %v62 = vld [vmem:[%s1 + $0x170] sm:$0xff]
  %v63 = vld [vmem:[%s1 + $0x178] sm:$0xff]
  %v64 = vld [vmem:[%s1 + $0x180] sm:$0xff]
  %v65 = vld [vmem:[%s1 + $0x188] sm:$0xff]
  %v66 = vld [vmem:[%s1 + $0x190] sm:$0xff]
  %v67 = vld [vmem:[%s1 + $0x198] sm:$0xff]
  %v68 = vld [vmem:[%s1 + $0x1a0] sm:$0xff]
  %v69 = vld [vmem:[%s1 + $0x1a8] sm:$0xff]
  %v70 = vld [vmem:[%s1 + $0x1b0] sm:$0xff]
  %v71 = vld [vmem:[%s1 + $0x1b8] sm:$0xff]
  %v72 = vld [vmem:[%s1 + $0x1c0] sm:$0xff]
  %v73 = vld [vmem:[%s1 + $0x1c8] sm:$0xff]
  %v74 = vld [vmem:[%s1 + $0x1d0] sm:$0xff]
  %v75 = vld [vmem:[%s1 + $0x1d8] sm:$0xff]
  %v76 = vld [vmem:[%s1 + $0x1e0] sm:$0xff]
  %v77 = vld [vmem:[%s1 + $0x1e8] sm:$0xff]
  %v78 = vld [vmem:[%s1 + $0x1f0] sm:$0xff]
  %v79 = vld [vmem:[%s1 + $0x1f8] sm:$0xff]
  %v80 = vld [vmem:[%s1 + $0x200] sm:$0xff]
  %v81 = vld [vmem:[%s1 + $0x208] sm:$0xff]
  %v82 = vld [vmem:[%s1 + $0x210] sm:$0xff]
  %v83 = vld [vmem:[%s1 + $0x218] sm:$0xff]
  %v84 = vld [vmem:[%s1 + $0x220] sm:$0xff]
  %v85 = vld [vmem:[%s1 + $0x228] sm:$0xff]
  %v86 = vld [vmem:[%s1 + $0x230] sm:$0xff]
  %v87 = vld [vmem:[%s1 + $0x238] sm:$0xff]
  %v88 = vld [vmem:[%s1 + $0x240] sm:$0xff]
  %v89 = vld [vmem:[%s1 + $0x248] sm:$0xff]
  %v90 = vld [vmem:[%s1 + $0x250] sm:$0xff]
  %v91 = vld [vmem:[%s1 + $0x258] sm:$0xff]
  %v92 = vld [vmem:[%s1 + $0x260] sm:$0xff]
  %v93 = vld [vmem:[%s1 + $0x268] sm:$0xff]
  %v94 = vld [vmem:[%s1 + $0x270] sm:$0xff]
  %v95 = vld [vmem:[%s1 + $0x278] sm:$0xff]
  %v96 = vld [vmem:[%s1 + $0x280] sm:$0xff]
  %v97 = vld [vmem:[%s1 + $0x288] sm:$0x11]
  %v98 = vld [vmem:[%s1 + $0x290] sm:$0x11]
  %v99 = vld [vmem:[%s1 + $0x298] sm:$0x11]
  %v100 = vld [vmem:[%s2] sm:$0x3f]
  %v102 = vperm.slane %v100, 0
  %v103 = vperm.slane %v100, 1
  %v104 = vperm.slane %v100, 2
  %v105 = vperm.slane %v100, 3
  %v106 = vperm.slane %v100, 4
  %v107 = vperm.slane %v100, 5
  %115 = vst [vmem:[#allocation1] ss:$9 sm:$0xff] %v15
  %v116 = vld [vmem:[#allocation1] sm:$0xff]
  %v117 = vld [vmem:[#allocation1 + $0x9] sm:$0xff]
  %v203 = vunpack.c.l.b16 %v16
  %v204 = vunpack.c.h.b16 %v16
  %v205 = vunpack.c.l.b16 %v17
  %v206 = vunpack.c.h.b16 %v17
  %v207 = vunpack.c.l.b16 %v18
  %v208 = vunpack.c.h.b16 %v18
  %v209 = vunpack.c.l.b16 %v19
  %v210 = vunpack.c.h.b16 %v19
  %v211 = vunpack.c.l.b16 %v20
  %v212 = vunpack.c.h.b16 %v20
  %v213 = vunpack.c.l.b16 %v21
  %v214 = vunpack.c.h.b16 %v21
  %v215 = vunpack.c.l.b16 %v22
  %v216 = vunpack.c.h.b16 %v22
  %v217 = vunpack.c.l.b16 %v23
  %v218 = vunpack.c.h.b16 %v23
  %v219 = vunpack.c.l.b16 %v24
  %v220 = vunpack.c.h.b16 %v24
  %v221 = vunpack.c.l.b16 %v25
  %v222 = vunpack.c.h.b16 %v25
  %v223 = vunpack.c.l.b16 %v26
  %v224 = vunpack.c.h.b16 %v26
  %v225 = vunpack.c.l.b16 %v27
  %v226 = vunpack.c.h.b16 %v27
  %v227 = vunpack.c.l.b16 %v28
  %v228 = vunpack.c.h.b16 %v28
  %v229 = vunpack.c.l.b16 %v29
  %v230 = vunpack.c.h.b16 %v29
  %v231 = vunpack.c.l.b16 %v30
  %v232 = vunpack.c.h.b16 %v30
  %v233 = vunpack.c.l.b16 %v31
  %v234 = vunpack.c.h.b16 %v31
  %v235 = vunpack.c.l.b16 %v32
  %v236 = vunpack.c.h.b16 %v32
  %v237 = vunpack.c.l.b16 %v33
  %v238 = vunpack.c.h.b16 %v33
  %v239 = vunpack.c.l.b16 %v34
  %v240 = vunpack.c.h.b16 %v34
  %v241 = vunpack.c.l.b16 %v35
  %v242 = vunpack.c.h.b16 %v35
  %v243 = vunpack.c.l.b16 %v36
  %v244 = vunpack.c.h.b16 %v36
  %v245 = vunpack.c.l.b16 %v37
  %v246 = vunpack.c.h.b16 %v37
  %v247 = vunpack.c.l.b16 %v38
  %v248 = vunpack.c.h.b16 %v38
  %v249 = vunpack.c.l.b16 %v39
  %v250 = vunpack.c.h.b16 %v39
  %v251 = vunpack.c.l.b16 %v40
  %v252 = vunpack.c.h.b16 %v40
  %v253 = vunpack.c.l.b16 %v41
  %v254 = vunpack.c.h.b16 %v41
  %v255 = vunpack.c.l.b16 %v42
  %v256 = vunpack.c.h.b16 %v42
  %v257 = vunpack.c.l.b16 %v43
  %v258 = vunpack.c.h.b16 %v43
  %v259 = vunpack.c.l.b16 %v44
  %v260 = vunpack.c.h.b16 %v44
  %v261 = vunpack.c.l.b16 %v45
  %v262 = vunpack.c.h.b16 %v45
  %v263 = vunpack.c.l.b16 %v46
  %v264 = vunpack.c.h.b16 %v46
  %v265 = vunpack.c.l.b16 %v47
  %v266 = vunpack.c.h.b16 %v47
  %v267 = vunpack.c.l.b16 %v48
  %v268 = vunpack.c.h.b16 %v48
  %v269 = vunpack.c.l.b16 %v49
  %v270 = vunpack.c.h.b16 %v49
  %v271 = vunpack.c.l.b16 %v50
  %v272 = vunpack.c.h.b16 %v50
  %v273 = vunpack.c.l.b16 %v51
  %v274 = vunpack.c.h.b16 %v51
  %v275 = vunpack.c.l.b16 %v52
  %v276 = vunpack.c.h.b16 %v52
  %v277 = vunpack.c.l.b16 %v53
  %v278 = vunpack.c.h.b16 %v53
  %v279 = vunpack.c.l.b16 %v54
  %v280 = vunpack.c.h.b16 %v54
  %v281 = vunpack.c.l.b16 %v55
  %v282 = vunpack.c.h.b16 %v55
  %v283 = vunpack.c.l.b16 %v56
  %v284 = vunpack.c.h.b16 %v56
  %v285 = vunpack.c.l.b16 %v57
  %v286 = vunpack.c.h.b16 %v57
  %v287 = vunpack.c.l.b16 %v58
  %v288 = vunpack.c.h.b16 %v58
  %v289 = vunpack.c.l.b16 %v59
  %v290 = vunpack.c.h.b16 %v59
  %v291 = vunpack.c.l.b16 %v60
  %v292 = vunpack.c.h.b16 %v60
  %v293 = vunpack.c.l.b16 %v61
  %v294 = vunpack.c.h.b16 %v61
  %v295 = vunpack.c.l.b16 %v62
  %v296 = vunpack.c.h.b16 %v62
  %v297 = vunpack.c.l.b16 %v63
  %v298 = vunpack.c.h.b16 %v63
  %v299 = vunpack.c.l.b16 %v64
  %v300 = vunpack.c.h.b16 %v64
  %v301 = vunpack.c.l.b16 %v65
  %v302 = vunpack.c.h.b16 %v65
  %v303 = vunpack.c.l.b16 %v66
  %v304 = vunpack.c.h.b16 %v66
  %v305 = vunpack.c.l.b16 %v67
  %v306 = vunpack.c.h.b16 %v67
  %v307 = vunpack.c.l.b16 %v68
  %v308 = vunpack.c.h.b16 %v68
  %v309 = vunpack.c.l.b16 %v69
  %v310 = vunpack.c.h.b16 %v69
  %v311 = vunpack.c.l.b16 %v70
  %v312 = vunpack.c.h.b16 %v70
  %v313 = vunpack.c.l.b16 %v71
  %v314 = vunpack.c.h.b16 %v71
  %v315 = vunpack.c.l.b16 %v72
  %v316 = vunpack.c.h.b16 %v72
  %v317 = vunpack.c.l.b16 %v73
  %v318 = vunpack.c.h.b16 %v73
  %v319 = vunpack.c.l.b16 %v74
  %v320 = vunpack.c.h.b16 %v74
  %v321 = vunpack.c.l.b16 %v75
  %v322 = vunpack.c.h.b16 %v75
  %v323 = vunpack.c.l.b16 %v76
  %v324 = vunpack.c.h.b16 %v76
  %v325 = vunpack.c.l.b16 %v77
  %v326 = vunpack.c.h.b16 %v77
  %v327 = vunpack.c.l.b16 %v78
  %v328 = vunpack.c.h.b16 %v78
  %v329 = vunpack.c.l.b16 %v79
  %v330 = vunpack.c.h.b16 %v79
  %v331 = vunpack.c.l.b16 %v80
  %v332 = vunpack.c.h.b16 %v80
  %v333 = vunpack.c.l.b16 %v81
  %v334 = vunpack.c.h.b16 %v81
  %v335 = vunpack.c.l.b16 %v82
  %v336 = vunpack.c.h.b16 %v82
  %v337 = vunpack.c.l.b16 %v83
  %v338 = vunpack.c.h.b16 %v83
  %v339 = vunpack.c.l.b16 %v84
  %v340 = vunpack.c.h.b16 %v84
  %v341 = vunpack.c.l.b16 %v85
  %v342 = vunpack.c.h.b16 %v85
  %v343 = vunpack.c.l.b16 %v86
  %v344 = vunpack.c.h.b16 %v86
  %v345 = vunpack.c.l.b16 %v87
  %v346 = vunpack.c.h.b16 %v87
  %v347 = vunpack.c.l.b16 %v88
  %v348 = vunpack.c.h.b16 %v88
  %v349 = vunpack.c.l.b16 %v89
  %v350 = vunpack.c.h.b16 %v89
  %v351 = vunpack.c.l.b16 %v90
  %v352 = vunpack.c.h.b16 %v90
  %v353 = vunpack.c.l.b16 %v91
  %v354 = vunpack.c.h.b16 %v91
  %v355 = vunpack.c.l.b16 %v92
  %v356 = vunpack.c.h.b16 %v92
  %v357 = vunpack.c.l.b16 %v93
  %v358 = vunpack.c.h.b16 %v93
  %v359 = vunpack.c.l.b16 %v94
  %v360 = vunpack.c.h.b16 %v94
  %v361 = vunpack.c.l.b16 %v95
  %v362 = vunpack.c.h.b16 %v95
  %v363 = vunpack.c.l.b16 %v96
  %v364 = vunpack.c.h.b16 %v96
  %v365 = vunpack.c.l.b16 %v97
  %v366 = vunpack.c.h.b16 %v97
  %v367 = vunpack.c.l.b16 %v98
  %v368 = vunpack.c.h.b16 %v98
  %v369 = vunpack.c.l.b16 %v99
  %v370 = vunpack.c.h.b16 %v99
  %v371 = vpack.c.b16 %v209, %v203
  %v372 = vpack.c.b16 %v210, %v204
  %v373 = vpack.c.b16 %v211, %v205
  %v374 = vpack.c.b16 %v212, %v206
  %v375 = vpack.c.b16 %v213, %v207
  %v376 = vpack.c.b16 %v214, %v208
  %v377 = vpack.c.b16 %v221, %v215
  %v378 = vpack.c.b16 %v222, %v216
  %v379 = vpack.c.b16 %v223, %v217
  %v380 = vpack.c.b16 %v224, %v218
  %v381 = vpack.c.b16 %v225, %v219
  %v382 = vpack.c.b16 %v226, %v220
  %v383 = vpack.c.b16 %v233, %v227
  %v384 = vpack.c.b16 %v234, %v228
  %v385 = vpack.c.b16 %v235, %v229
  %v386 = vpack.c.b16 %v236, %v230
  %v387 = vpack.c.b16 %v237, %v231
  %v388 = vpack.c.b16 %v238, %v232
  %v389 = vpack.c.b16 %v245, %v239
  %v390 = vpack.c.b16 %v246, %v240
  %v391 = vpack.c.b16 %v247, %v241
  %v392 = vpack.c.b16 %v248, %v242
  %v393 = vpack.c.b16 %v249, %v243
  %v394 = vpack.c.b16 %v250, %v244
  %v395 = vpack.c.b16 %v257, %v251
  %v396 = vpack.c.b16 %v258, %v252
  %v397 = vpack.c.b16 %v259, %v253
  %v398 = vpack.c.b16 %v260, %v254
  %v399 = vpack.c.b16 %v261, %v255
  %v400 = vpack.c.b16 %v262, %v256
  %v401 = vpack.c.b16 %v269, %v263
  %v402 = vpack.c.b16 %v270, %v264
  %v403 = vpack.c.b16 %v271, %v265
  %v404 = vpack.c.b16 %v272, %v266
  %v405 = vpack.c.b16 %v273, %v267
  %v406 = vpack.c.b16 %v274, %v268
  %v407 = vpack.c.b16 %v281, %v275
  %v408 = vpack.c.b16 %v282, %v276
  %v409 = vpack.c.b16 %v283, %v277
  %v410 = vpack.c.b16 %v284, %v278
  %v411 = vpack.c.b16 %v285, %v279
  %v412 = vpack.c.b16 %v286, %v280
  %v413 = vpack.c.b16 %v293, %v287
  %v414 = vpack.c.b16 %v294, %v288
  %v415 = vpack.c.b16 %v295, %v289
  %v416 = vpack.c.b16 %v296, %v290
  %v417 = vpack.c.b16 %v297, %v291
  %v418 = vpack.c.b16 %v298, %v292
  %v419 = vpack.c.b16 %v305, %v299
  %v420 = vpack.c.b16 %v306, %v300
  %v421 = vpack.c.b16 %v307, %v301
  %v422 = vpack.c.b16 %v308, %v302
  %v423 = vpack.c.b16 %v309, %v303
  %v424 = vpack.c.b16 %v310, %v304
  %v425 = vpack.c.b16 %v317, %v311
  %v426 = vpack.c.b16 %v318, %v312
  %v427 = vpack.c.b16 %v319, %v313
  %v428 = vpack.c.b16 %v320, %v314
  %v429 = vpack.c.b16 %v321, %v315
  %v430 = vpack.c.b16 %v322, %v316
  %v431 = vpack.c.b16 %v329, %v323
  %v432 = vpack.c.b16 %v330, %v324
  %v433 = vpack.c.b16 %v331, %v325
  %v434 = vpack.c.b16 %v332, %v326
  %v435 = vpack.c.b16 %v333, %v327
  %v436 = vpack.c.b16 %v334, %v328
  %v437 = vpack.c.b16 %v341, %v335
  %v438 = vpack.c.b16 %v342, %v336
  %v439 = vpack.c.b16 %v343, %v337
  %v440 = vpack.c.b16 %v344, %v338
  %v441 = vpack.c.b16 %v345, %v339
  %v442 = vpack.c.b16 %v346, %v340
  %v443 = vpack.c.b16 %v353, %v347
  %v444 = vpack.c.b16 %v354, %v348
  %v445 = vpack.c.b16 %v355, %v349
  %v446 = vpack.c.b16 %v356, %v350
  %v447 = vpack.c.b16 %v357, %v351
  %v448 = vpack.c.b16 %v358, %v352
  %v449 = vpack.c.b16 %v365, %v359
  %v450 = vpack.c.b16 %v366, %v360
  %v451 = vpack.c.b16 %v367, %v361
  %v452 = vpack.c.b16 %v368, %v362
  %v453 = vpack.c.b16 %v369, %v363
  %v454 = vpack.c.b16 %v370, %v364
  %vm533 = vcmask 728064
  %v534 = vsel %vm533, %v117, 0
  %vm536 = vcmask 1043456
  %vm537 = vcmask 1044480
  %v538 = vsel %vm536, 4294967295, 65535
  %v539 = vsel %vm537, %v538, 0
  %v541 = vand.u32 %v449, %v539
  %v544 = vand.u32 %v450, %v539
  %v547 = vand.u32 %v451, %v539
  %v550 = vand.u32 %v452, %v539
  %v553 = vand.u32 %v453, %v539
  %v556 = vand.u32 %v454, %v539
  %558 = vmatpush.bf16.msra.mxu0 %v413
  %559 = vmatpush.bf16.msra.mxu0 %v407
  %560 = vmatpush.bf16.msra.mxu0 %v401
  %561 = vmatpush.bf16.msra.mxu0 %v395
  %562 = vmatpush.bf16.msra.mxu0 %v389
  %563 = vmatpush.bf16.msra.mxu0 %v383
  %564 = vmatpush.bf16.msra.mxu0 %v377
  %565 = vmatpush.bf16.msra.mxu0 %v371
  %566 = vmatmul.bf16.gmra.mxu0 %v116
  %v567 = vpop.f32.mrf.mxu0
  %v568 = vadd.f32 %v102, %v567
  %v569 = vpop.f32.mrf.mxu0
  %570 = vdwg.mxu0
  %571 = vmatpush.bf16.msra.mxu0 0
  %572 = vmatpush.bf16.msra.mxu0 0
  %573 = vmatpush.bf16.msra.mxu0 %v541
  %574 = vmatpush.bf16.msra.mxu0 %v443
  %575 = vmatpush.bf16.msra.mxu0 %v437
  %576 = vmatpush.bf16.msra.mxu0 %v431
  %577 = vmatpush.bf16.msra.mxu0 %v425
  %578 = vmatpush.bf16.msra.mxu0 %v419
  %579 = vmatmul.bf16.gmra.mxu0 %v534
  %v580 = vpop.f32.mrf.mxu0
  %v581 = vadd.f32 %v568, %v580
  %v582 = vpop.f32.mrf.mxu0
  %583 = vdwg.mxu0
  %584 = vmatpush.bf16.msra.mxu0 %v414
  %585 = vmatpush.bf16.msra.mxu0 %v408
  %586 = vmatpush.bf16.msra.mxu0 %v402
  %587 = vmatpush.bf16.msra.mxu0 %v396
  %588 = vmatpush.bf16.msra.mxu0 %v390
  %589 = vmatpush.bf16.msra.mxu0 %v384
  %590 = vmatpush.bf16.msra.mxu0 %v378
  %591 = vmatpush.bf16.msra.mxu0 %v372
  %592 = vmatmul.bf16.gmra.mxu0 %v116
  %v593 = vpop.f32.mrf.mxu0
  %v594 = vadd.f32 %v103, %v593
  %v595 = vpop.f32.mrf.mxu0
  %596 = vdwg.mxu0
  %597 = vmatpush.bf16.msra.mxu0 0
  %598 = vmatpush.bf16.msra.mxu0 0
  %599 = vmatpush.bf16.msra.mxu0 %v544
  %600 = vmatpush.bf16.msra.mxu0 %v444
  %601 = vmatpush.bf16.msra.mxu0 %v438
  %602 = vmatpush.bf16.msra.mxu0 %v432
  %603 = vmatpush.bf16.msra.mxu0 %v426
  %604 = vmatpush.bf16.msra.mxu0 %v420
  %605 = vmatmul.bf16.gmra.mxu0 %v534
  %v606 = vpop.f32.mrf.mxu0
  %v607 = vadd.f32 %v594, %v606
  %v608 = vpop.f32.mrf.mxu0
  %609 = vdwg.mxu0
  %610 = vmatpush.bf16.msra.mxu0 %v415
  %611 = vmatpush.bf16.msra.mxu0 %v409
  %612 = vmatpush.bf16.msra.mxu0 %v403
  %613 = vmatpush.bf16.msra.mxu0 %v397
  %614 = vmatpush.bf16.msra.mxu0 %v391
  %615 = vmatpush.bf16.msra.mxu0 %v385
  %616 = vmatpush.bf16.msra.mxu0 %v379
  %617 = vmatpush.bf16.msra.mxu0 %v373
  %618 = vmatmul.bf16.gmra.mxu0 %v116
  %v619 = vpop.f32.mrf.mxu0
  %v620 = vadd.f32 %v104, %v619
  %v621 = vpop.f32.mrf.mxu0
  %622 = vdwg.mxu0
  %623 = vmatpush.bf16.msra.mxu0 0
  %624 = vmatpush.bf16.msra.mxu0 0
  %625 = vmatpush.bf16.msra.mxu0 %v547
  %626 = vmatpush.bf16.msra.mxu0 %v445
  %627 = vmatpush.bf16.msra.mxu0 %v439
  %628 = vmatpush.bf16.msra.mxu0 %v433
  %629 = vmatpush.bf16.msra.mxu0 %v427
  %630 = vmatpush.bf16.msra.mxu0 %v421
  %631 = vmatmul.bf16.gmra.mxu0 %v534
  %v632 = vpop.f32.mrf.mxu0
  %v633 = vadd.f32 %v620, %v632
  %v634 = vpop.f32.mrf.mxu0
  %635 = vdwg.mxu0
  %636 = vmatpush.bf16.msra.mxu0 %v416
  %637 = vmatpush.bf16.msra.mxu0 %v410
  %638 = vmatpush.bf16.msra.mxu0 %v404
  %639 = vmatpush.bf16.msra.mxu0 %v398
  %640 = vmatpush.bf16.msra.mxu0 %v392
  %641 = vmatpush.bf16.msra.mxu0 %v386
  %642 = vmatpush.bf16.msra.mxu0 %v380
  %643 = vmatpush.bf16.msra.mxu0 %v374
  %644 = vmatmul.bf16.gmra.mxu0 %v116
  %v645 = vpop.f32.mrf.mxu0
  %v646 = vadd.f32 %v105, %v645
  %v647 = vpop.f32.mrf.mxu0
  %648 = vdwg.mxu0
  %649 = vmatpush.bf16.msra.mxu0 0
  %650 = vmatpush.bf16.msra.mxu0 0
  %651 = vmatpush.bf16.msra.mxu0 %v550
  %652 = vmatpush.bf16.msra.mxu0 %v446
  %653 = vmatpush.bf16.msra.mxu0 %v440
  %654 = vmatpush.bf16.msra.mxu0 %v434
  %655 = vmatpush.bf16.msra.mxu0 %v428
  %656 = vmatpush.bf16.msra.mxu0 %v422
  %657 = vmatmul.bf16.gmra.mxu0 %v534
  %v658 = vpop.f32.mrf.mxu0
  %v659 = vadd.f32 %v646, %v658
  %v660 = vpop.f32.mrf.mxu0
  %661 = vdwg.mxu0
  %662 = vmatpush.bf16.msra.mxu0 %v417
  %663 = vmatpush.bf16.msra.mxu0 %v411
  %664 = vmatpush.bf16.msra.mxu0 %v405
  %665 = vmatpush.bf16.msra.mxu0 %v399
  %666 = vmatpush.bf16.msra.mxu0 %v393
  %667 = vmatpush.bf16.msra.mxu0 %v387
  %668 = vmatpush.bf16.msra.mxu0 %v381
  %669 = vmatpush.bf16.msra.mxu0 %v375
  %670 = vmatmul.bf16.gmra.mxu0 %v116
  %v671 = vpop.f32.mrf.mxu0
  %v672 = vadd.f32 %v106, %v671
  %v673 = vpop.f32.mrf.mxu0
  %674 = vdwg.mxu0
  %675 = vmatpush.bf16.msra.mxu0 0
  %676 = vmatpush.bf16.msra.mxu0 0
  %677 = vmatpush.bf16.msra.mxu0 %v553
  %678 = vmatpush.bf16.msra.mxu0 %v447
  %679 = vmatpush.bf16.msra.mxu0 %v441
  %680 = vmatpush.bf16.msra.mxu0 %v435
  %681 = vmatpush.bf16.msra.mxu0 %v429
  %682 = vmatpush.bf16.msra.mxu0 %v423
  %683 = vmatmul.bf16.gmra.mxu0 %v534
  %v684 = vpop.f32.mrf.mxu0
  %v685 = vadd.f32 %v672, %v684
  %v686 = vpop.f32.mrf.mxu0
  %687 = vdwg.mxu0
  %688 = vmatpush.bf16.msra.mxu0 %v418
  %689 = vmatpush.bf16.msra.mxu0 %v412
  %690 = vmatpush.bf16.msra.mxu0 %v406
  %691 = vmatpush.bf16.msra.mxu0 %v400
  %692 = vmatpush.bf16.msra.mxu0 %v394
  %693 = vmatpush.bf16.msra.mxu0 %v388
  %694 = vmatpush.bf16.msra.mxu0 %v382
  %695 = vmatpush.bf16.msra.mxu0 %v376
  %696 = vmatmul.bf16.gmra.mxu0 %v116
  %v697 = vpop.f32.mrf.mxu0
  %v698 = vadd.f32 %v107, %v697
  %v699 = vpop.f32.mrf.mxu0
  %700 = vdwg.mxu0
  %701 = vmatpush.bf16.msra.mxu0 0
  %702 = vmatpush.bf16.msra.mxu0 0
  %703 = vmatpush.bf16.msra.mxu0 %v556
  %704 = vmatpush.bf16.msra.mxu0 %v448
  %705 = vmatpush.bf16.msra.mxu0 %v442
  %706 = vmatpush.bf16.msra.mxu0 %v436
  %707 = vmatpush.bf16.msra.mxu0 %v430
  %708 = vmatpush.bf16.msra.mxu0 %v424
  %709 = vmatmul.bf16.gmra.mxu0 %v534
  %v710 = vpop.f32.mrf.mxu0
  %v711 = vadd.f32 %v698, %v710
  %v712 = vpop.f32.mrf.mxu0
  %713 = vdwg.mxu0
  %v720 = vrot.slane %v607, 6
  %v721 = vrot.slane %v633, 4
  %v722 = vrot.slane %v659, 2
  %v723 = vrot.slane %v711, 6
  %vm724 = vcmask 1041408
  %v725 = vsel %vm724, %v581, %v720
  %vm726 = vcmask 1045508
  %v727 = vsel %vm726, %v721, %v722
  %v728 = vsel %vm536, %v725, %v727
  %v729 = vsel %vm724, %v685, %v723
  %732 = vst [vmem:[%s3] sm:$0xff] %v728
  %733 = vst [vmem:[%s3 + $0x8] sm:$0xf] %v729
  // Predicated region
  $region14: #{_lambda_.2} parent=0 // pred_check
    _
  $region15: #{_lambda_.2} parent=0 // pred_check_branch
    %735 = sbr.rel (0) target = $region17
  $region16: #{_lambda_.2} parent=0 // pred_region
    _
  $region17: #{_lambda_.2} parent=0 // pred_fallthru
    _
  // Predicated region
  $region18: #{_lambda_.2} parent=0 // pred_check
    _
  $region19: #{_lambda_.2} parent=0 // pred_check_branch
    %737 = sbr.rel (0) target = $region21
  $region20: #{_lambda_.2} parent=0 // pred_region
    _
  $region21: #{_lambda_.2} parent=0 // pred_fallthru
    _

</llo_original>
